<compile_context>
chip_gen: v5e
topology: v5e:2x2
jax: 0.10.0
libtpu: 0.0.40
codegen_flags: <defaults>
</compile_context>

<pallas_src>
import jax
import jax.numpy as jnp
import numpy as np
from jax import lax
from jax.experimental import pallas as pl
from jax.experimental.pallas import tpu as pltpu

PAD = 4  # module's self._pad


def _make_kernel(nb, h, w, c):
    """Kernel over a block of `nb` images in lane-dense (rows x (W*C) lanes) layout."""
    wc = w * c

    def kernel(shift_ref, x_ref, o_ref):
        # shift_ref: SMEM (2*N,) int32 = [sx0, sy0, sx1, sy1, ...]
        # x_ref:     VMEM (nb, h + 2*PAD, (w + 2*PAD) * c)  replicate-padded images
        # o_ref:     VMEM (nb, h, w * c)
        g = pl.program_id(0)

        def body(i, carry):
            n = g * nb + i
            sx = shift_ref[2 * n]          # width  (grid-x / column) shift in [0, 2*PAD]
            sy = shift_ref[2 * n + 1]      # height (grid-y / row)    shift in [0, 2*PAD]

            # Row crop: dynamic offset on the (non-lane) row axis.
            rows = x_ref[i, pl.ds(sy, h), :]                 # (h, (w + 2*PAD) * c)

            # Column crop: the lane offset sx*c has only 2*PAD+1 possible values, so
            # select among the static lane-offset slices instead of a dynamic lane load.
            out = rows[:, :wc]                               # sx == 0 candidate
            for s in range(1, 2 * PAD + 1):
                out = jnp.where(sx == s, rows[:, s * c:s * c + wc], out)

            o_ref[i] = out
            return carry

        lax.fori_loop(0, nb, body, 0)

    return kernel


def _pick_block(n, max_nb):
    for nb in range(min(max_nb, n), 0, -1):
        if n % nb == 0:
            return nb
    return 1


def random_shifts_aug(x, shift, *, images_per_step=8):
    """Random-shift augmentation (crop of the replicate-padded image at integer offsets).

    x:     (..., H, W, C) float array with H == W.
    shift: (N, 2) integers, N = prod(leading dims); shift[:, 0] is the width (x) shift,
           shift[:, 1] the height (y) shift, both in [0, 2*PAD]  (same convention as the
           PyTorch module's grid-x / grid-y shift components).  Must be integer-valued.
    """
    shape = x.shape
    H, W, C = shape[-3:]
    assert H == W
    x4 = x.reshape(-1, H, W, C)
    N = x4.shape[0]

    shift = jnp.asarray(shift, dtype=jnp.int32).reshape(-1)  # flat 1-D: tiny SMEM footprint
    assert shift.shape == (2 * N,)

    HP, WP = H + 2 * PAD, W + 2 * PAD
    WC, WPC = W * C, WP * C
    NB = _pick_block(N, images_per_step)

    # Replicate pad (== F.pad(x, (4,4,4,4), 'replicate')), then flatten so the last
    # (lane) dim is (W+2*PAD)*C -> dense vector loads/stores in the kernel.
    xp = jnp.pad(x4, ((0, 0), (PAD, PAD), (PAD, PAD), (0, 0)), mode="edge")
    xp = xp.reshape(N, HP, WPC)

    out = pl.pallas_call(
        _make_kernel(NB, H, W, C),
        out_shape=jax.ShapeDtypeStruct((N, H, WC), x.dtype),
        grid_spec=pltpu.PrefetchScalarGridSpec(
            num_scalar_prefetch=1,
            grid=(N // NB,),
            in_specs=[pl.BlockSpec((NB, HP, WPC), lambda g, s: (g, 0, 0))],
            out_specs=pl.BlockSpec((NB, H, WC), lambda g, s: (g, 0, 0)),
        ),
        compiler_params=pltpu.CompilerParams(dimension_semantics=("parallel",)),
    )(shift, xp)

    return out.reshape(shape)


def random_shifts_aug_rng(x, key, *, images_per_step=8):
    """Module-like forward that draws the per-image integer shifts internally.

    TODO(synk): torch.randint's exact RNG stream is not reproducible in JAX; the shifts
    follow the same distribution (uniform over [0, 2*PAD]) but not the same stream.
    """
    n = int(np.prod(x.shape[:-3], dtype=np.int64))
    shift = jax.random.randint(key, (n, 2), 0, 2 * PAD + 1, dtype=jnp.int32)
    return random_shifts_aug(x, shift, images_per_step=images_per_step)


if __name__ == "__main__":
    key = jax.random.PRNGKey(0)
    kx, ks, kr = jax.random.split(key, 3)

    B, T, H, W, C = 2, 8, 16, 16, 4          # N = 16 images -> NB = 8, grid = (2,)
    x = jax.random.normal(kx, (B, T, H, W, C), dtype=jnp.float32)
    N = B * T
    shift = jax.random.randint(ks, (N, 2), 0, 2 * PAD + 1, dtype=jnp.int32)

    out = jax.block_until_ready(random_shifts_aug(x, shift))

    # Module-like path (internally drawn shifts) -- just exercise it.
    out_rng = jax.block_until_ready(random_shifts_aug_rng(x, kr))
    assert out_rng.shape == x.shape and out_rng.dtype == x.dtype

    # Pure-numpy reference: replicate pad + integer crop (exactly what the integer-shift
    # align_corners=False bilinear grid_sample computes).
    x4 = np.asarray(x).reshape(N, H, W, C)
    padded = np.pad(x4, ((0, 0), (PAD, PAD), (PAD, PAD), (0, 0)), mode="edge")
    sh = np.asarray(shift)
    ref = np.stack(
        [padded[n, sh[n, 1]:sh[n, 1] + H, sh[n, 0]:sh[n, 0] + W, :] for n in range(N)]
    ).reshape(B, T, H, W, C)

    np.testing.assert_allclose(np.asarray(out), ref, rtol=0, atol=0)
    assert out.shape == x.shape and out.dtype == x.dtype
    print("KERNEL_OK")
</pallas_src>

<mosaic_0001>
module attributes {stable_mosaic.version = 11 : i64} {
  func.func @kernel(%arg0: i32, %arg1: memref<32xi32, #tpu.memory_space<smem>>, %arg2: memref<8x24x96xf32, #tpu.memory_space<vmem>>, %arg3: memref<8x16x64xf32, #tpu.memory_space<vmem>>) attributes {dimension_semantics = [#tpu.dimension_semantics<parallel>], iteration_bounds = array<i64: 2>, scalar_prefetch = 1 : i64, scratch_operands = 0 : i64, tpu.core_type = #tpu.core_type<tc>, window_params = [{transform_indices = @transform_0, window_bounds = array<i64: 8, 24, 96>}, {transform_indices = @transform_1, window_bounds = array<i64: 8, 16, 64>}]} {
    %c0_i32 = arith.constant 0 : i32
    %c8_i32 = arith.constant 8 : i32
    %0 = arith.addi %c0_i32, %c8_i32 : i32
    %c1_i32 = arith.constant 1 : i32
    scf.for %arg4 = %c0_i32 to %0 step %c1_i32  : i32 {
      %c8_i32_1 = arith.constant 8 : i32
      %1 = arith.muli %arg0, %c8_i32_1 : i32
      %2 = arith.addi %1, %arg4 : i32
      %c2_i32 = arith.constant 2 : i32
      %3 = arith.muli %c2_i32, %2 : i32
      %4 = arith.index_cast %3 : i32 to index
      %5 = memref.load %arg1[%4] : memref<32xi32, #tpu.memory_space<smem>>
      %c2_i32_2 = arith.constant 2 : i32
      %6 = arith.muli %c2_i32_2, %2 : i32
      %c1_i32_3 = arith.constant 1 : i32
      %7 = arith.addi %6, %c1_i32_3 : i32
      %8 = arith.index_cast %7 : i32 to index
      %9 = memref.load %arg1[%8] : memref<32xi32, #tpu.memory_space<smem>>
      %10 = arith.index_cast %arg4 : i32 to index
      %11 = arith.index_cast %9 : i32 to index
      %c0 = arith.constant 0 : index
      %12 = vector.load %arg2[%10, %11, %c0] : memref<8x24x96xf32, #tpu.memory_space<vmem>>, vector<1x16x96xf32>
      %13 = vector.shape_cast %12 : vector<1x16x96xf32> to vector<16x96xf32>
      %14 = vector.extract_strided_slice %13 {offsets = [0, 0], sizes = [16, 64], strides = [1, 1]} : vector<16x96xf32> to vector<16x64xf32>
      %c1_i32_4 = arith.constant 1 : i32
      %15 = arith.cmpi eq, %5, %c1_i32_4 : i32
      %16 = vector.extract_strided_slice %13 {offsets = [0, 4], sizes = [16, 64], strides = [1, 1]} : vector<16x96xf32> to vector<16x64xf32>
      %17 = arith.select %15, %16, %14 : vector<16x64xf32>
      %c2_i32_5 = arith.constant 2 : i32
      %18 = arith.cmpi eq, %5, %c2_i32_5 : i32
      %19 = vector.extract_strided_slice %13 {offsets = [0, 8], sizes = [16, 64], strides = [1, 1]} : vector<16x96xf32> to vector<16x64xf32>
      %20 = arith.select %18, %19, %17 : vector<16x64xf32>
      %c3_i32 = arith.constant 3 : i32
      %21 = arith.cmpi eq, %5, %c3_i32 : i32
      %22 = vector.extract_strided_slice %13 {offsets = [0, 12], sizes = [16, 64], strides = [1, 1]} : vector<16x96xf32> to vector<16x64xf32>
      %23 = arith.select %21, %22, %20 : vector<16x64xf32>
      %c4_i32 = arith.constant 4 : i32
      %24 = arith.cmpi eq, %5, %c4_i32 : i32
      %25 = vector.extract_strided_slice %13 {offsets = [0, 16], sizes = [16, 64], strides = [1, 1]} : vector<16x96xf32> to vector<16x64xf32>
      %26 = arith.select %24, %25, %23 : vector<16x64xf32>
      %c5_i32 = arith.constant 5 : i32
      %27 = arith.cmpi eq, %5, %c5_i32 : i32
      %28 = vector.extract_strided_slice %13 {offsets = [0, 20], sizes = [16, 64], strides = [1, 1]} : vector<16x96xf32> to vector<16x64xf32>
      %29 = arith.select %27, %28, %26 : vector<16x64xf32>
      %c6_i32 = arith.constant 6 : i32
      %30 = arith.cmpi eq, %5, %c6_i32 : i32
      %31 = vector.extract_strided_slice %13 {offsets = [0, 24], sizes = [16, 64], strides = [1, 1]} : vector<16x96xf32> to vector<16x64xf32>
      %32 = arith.select %30, %31, %29 : vector<16x64xf32>
      %c7_i32 = arith.constant 7 : i32
      %33 = arith.cmpi eq, %5, %c7_i32 : i32
      %34 = vector.extract_strided_slice %13 {offsets = [0, 28], sizes = [16, 64], strides = [1, 1]} : vector<16x96xf32> to vector<16x64xf32>
      %35 = arith.select %33, %34, %32 : vector<16x64xf32>
      %c8_i32_6 = arith.constant 8 : i32
      %36 = arith.cmpi eq, %5, %c8_i32_6 : i32
      %37 = vector.extract_strided_slice %13 {offsets = [0, 32], sizes = [16, 64], strides = [1, 1]} : vector<16x96xf32> to vector<16x64xf32>
      %38 = arith.select %36, %37, %35 : vector<16x64xf32>
      %39 = arith.index_cast %arg4 : i32 to index
      %c0_7 = arith.constant 0 : index
      %c0_8 = arith.constant 0 : index
      %40 = vector.load %arg3[%39, %c0_7, %c0_8] : memref<8x16x64xf32, #tpu.memory_space<vmem>>, vector<1x16x64xf32>
      %41 = vector.shape_cast %40 : vector<1x16x64xf32> to vector<16x64xf32>
      %42 = vector.shape_cast %38 : vector<16x64xf32> to vector<1x16x64xf32>
      tpu.vector_store %arg3[%39, %c0_7, %c0_8], %42 {strides = array<i32>} : memref<8x16x64xf32, #tpu.memory_space<vmem>>, vector<1x16x64xf32>,
    }
    %c8_i32_0 = arith.constant 8 : i32
    return
  }
  func.func @transform_0(%arg0: i32, %arg1: memref<32xi32, #tpu.memory_space<smem>>) -> (i32, i32, i32) {
    %c0_i32 = arith.constant 0 : i32
    %c0_i32_0 = arith.constant 0 : i32
    %c0_i32_1 = arith.constant 0 : i32
    return %arg0, %c0_i32, %c0_i32_0 : i32, i32, i32
  }
  func.func @transform_1(%arg0: i32, %arg1: memref<32xi32, #tpu.memory_space<smem>>) -> (i32, i32, i32) {
    %c0_i32 = arith.constant 0 : i32
    %c0_i32_0 = arith.constant 0 : i32
    %c0_i32_1 = arith.constant 0 : i32
    return %arg0, %c0_i32, %c0_i32_0 : i32, i32, i32
  }
}

</mosaic_0001>

<llo_original>
// kernel: tpu_custom_call.1
$region0: #{tpu_custom_call.1}
  #allocation0 [shape = 'u32[]', space=smem, size = 0x4, offset = 0x4, fixed_abs, tag = 'smem constant byte address 0x4 - core index']
  #allocation1 [shape = 'u32[72,128]{1,0:T(1,128)}', space=vmem, size = 0x9000, scoped, tag = 'internal scratch']
  #allocation2 [shape = 's32[1]{0}', space=sflag, size = 0x4, scoped, tag = 'scoped memory for tpu_custom_call.1']
  #allocation3 [shape = 'u8[512]{0}', space=smem, size = 0x200, scoped, tag = 'prefetched SMEM operand 0']
  %s0 = inlined_call_operand.hbm [shape: s32[32], index: 0, kind: input, shape index: {}]
  %s1 = inlined_call_operand.hbm [shape: f32[16,24,96], index: 1, kind: input, shape index: {}]
  %s2 = inlined_call_operand.hbm [shape: f32[16,16,64], index: 2, kind: output, shape index: {}]
  %s3 = sld [smem:[#allocation0]]
  $region48: #{tpu_custom_call.1} parent=0
    _
  %s5 = ssub.s32 1, %s3
  %s6 = scalar_select 0, %s5, %s3
  %s8 = sshll.u32 %s0, 4
  %s9 = int_to_ptr.hbm [resolvable:$true] %s8
  %11 = dma.hbm_to_smem %s9, 16, [#allocation3], [#allocation2]
  %13 = dma.done [#allocation2], 16
  %14 = sfence
  $region1: #{tpu_custom_call.1} parent=0
    #allocation4 [shape = 'u8[196608]{0}', space=vmem, size = 0x30000, scoped, tag = 'input window, operand 1']
    #allocation5 [shape = 's32[2]{0}', space=sflag, size = 0x8, scoped, tag = 'scoped memory for tpu_custom_call.1']
    #allocation6 [shape = 's32[2]{0}', space=sflag, size = 0x8, scoped, tag = 'scoped memory for tpu_custom_call.1']
    #allocation7 [shape = 'u8[131072]{0}', space=vmem, size = 0x20000, scoped, tag = 'output window, operand 0']
    %15 = vsyncpa [#allocation5], 0
    %s16 = scalar_lea.sflag [#allocation5], 1
    %17 = vsyncpa %s16, 0
    %18 = vsyncpa [#allocation6], 0
    %s19 = scalar_lea.sflag [#allocation6], 1
    %20 = vsyncpa %s19, 0
    loop: start=0, step=1, limit=4
    $region2: #{tpu_custom_call.1} parent=1 // loop_pre_header
      _
    $region3: #{tpu_custom_call.1} parent=1 // loop_header
      %s22 = sphi 0, %s26
      %p23 = scmp.ge.s32.totalorder %s22, 4
      %s32 = sphi 0, %s34
      %s35 = sphi 0, %s32
      %s36 = sphi 0, %s35
      %s52 = sphi 0, %s36
      %s58 = sphi 0, %s60
      %s61 = sphi 0, %s58
      %s62 = sphi 0, %s61
      %s78 = sphi 0, %s62
    $region4: #{tpu_custom_call.1} parent=1 // loop_header_branch
      %25 = sbr.rel (%p23) target = $region8
    $region5: #{tpu_custom_call.1} parent=1 // loop_body
      %s27 = ssub.s32 %s22, 1
      %s28 = ssub.s32 %s22, 2
      %s29 = sadd.s32 %s22, 1
      %s30 = ssub.s32 %s22, %s29
      %p31 = scmp.eq.s32.totalorder %s30, 0
      %s33 = sadd.s32 %s32, 1
      %s34 = scalar_select %p31, %s32, %s33
      %p37 = pneg %p31
      %p38 = scmp.eq.s32.totalorder %s22, 1
      %p39 = por %p37, %p38
      %p40 = scmp.ne.s32.totalorder %s32, %s35
      %p41 = scmp.eq.s32.totalorder %s22, 0
      %p42 = por %p40, %p41
      %p43 = scmp.ne.s32.totalorder %s32, %s35
      %p44 = scmp.eq.s32.totalorder %s27, 1
      %p45 = por %p43, %p44
      %p46 = scmp.ne.s32.totalorder %s35, %s36
      %p47 = scmp.eq.s32.totalorder %s27, 0
      %p48 = por %p46, %p47
      %p49 = scmp.ne.s32.totalorder %s35, %s36
      %p50 = scmp.eq.s32.totalorder %s28, 1
      %p51 = por %p49, %p50
      %p53 = scmp.ne.s32.totalorder %s36, %s52
      %p54 = scmp.eq.s32.totalorder %s28, 0
      %p55 = por %p53, %p54
      %s56 = ssub.s32 %s22, %s29
      %p57 = scmp.eq.s32.totalorder %s56, 0
      %s59 = sadd.s32 %s58, 1
      %s60 = scalar_select %p57, %s58, %s59
      %p63 = pneg %p57
      %p64 = scmp.eq.s32.totalorder %s22, 1
      %p65 = por %p63, %p64
      %p66 = scmp.ne.s32.totalorder %s58, %s61
      %p67 = scmp.eq.s32.totalorder %s22, 0
      %p68 = por %p66, %p67
      %p69 = scmp.ne.s32.totalorder %s58, %s61
      %p70 = scmp.eq.s32.totalorder %s27, 1
      %p71 = por %p69, %p70
      %p72 = scmp.ne.s32.totalorder %s61, %s62
      %p73 = scmp.eq.s32.totalorder %s27, 0
      %p74 = por %p72, %p73
      %p75 = scmp.ne.s32.totalorder %s61, %s62
      %p76 = scmp.eq.s32.totalorder %s28, 1
      %p77 = por %p75, %p76
      %p79 = scmp.ne.s32.totalorder %s62, %s78
      %p80 = scmp.eq.s32.totalorder %s28, 0
      %p81 = por %p79, %p80
      %p82 = scmp.le.s32.totalorder 1, %s22
      %p83 = scmp.lt.s32.totalorder %s22, 3
      %p84 = pnand %p82, %p83
      %p85 = pneg %p84
      // Predicated region
      $region9: #{tpu_custom_call.1} parent=5 // pred_check
        _
      $region10: #{tpu_custom_call.1} parent=5 // pred_check_branch
        %87 = sbr.rel (%p84) target = $region12
      $region11: #{tpu_custom_call.1} parent=5 // pred_region
        %s88 = ssub.s32 %s22, 1
      $region12: #{tpu_custom_call.1} parent=5 // pred_fallthru
        _
      %p89 = scmp.lt.s32.totalorder %s22, 2
      // Predicated region
      $region13: #{tpu_custom_call.1} parent=5 // pred_check
        %p90 = pneg %p89
      $region14: #{tpu_custom_call.1} parent=5 // pred_check_branch
        %92 = sbr.rel (%p90) target = $region16
      $region15: #{tpu_custom_call.1} parent=5 // pred_region
        // Predicated region
        $region17: #{tpu_custom_call.1} parent=15 // pred_check
          %p93 = pneg %p42
        $region18: #{tpu_custom_call.1} parent=15 // pred_check_branch
          %95 = sbr.rel (%p93) target = $region20
        $region19: #{tpu_custom_call.1} parent=15 // pred_region
          %s96 = sand.u32 %s32, 1
          %s97 = scalar_lea.sflag [#allocation5], %s96
          %s98 = sand.u32 %s32, 1
          %s99 = smul.addr %s98, 192
          %s100 = scalar_lea.vmem [#allocation4], %s99
          %s101 = smul.u32 8, %s22
          %103 = vsyncadd %s97, 0
          %s104 = smul.addr %s101, 3
          %s105 = smul.addr %s104, 8
          %s106 = scalar_lea.hbm %s1, %s105
          %s107 = sshll.u32 %s106, 4
          %s108 = int_to_ptr.hbm [resolvable:$true] %s107
          %s109 = sshll.u32 %s100, 4
          %s110 = int_to_ptr.vmem [resolvable:$true] %s109
          %115 = dma.hbm_to_vmem [thread:$0]  %s108, 3072, %s110, %s97, 128, 128, 8
        $region20: #{tpu_custom_call.1} parent=15 // pred_fallthru
          _
      $region16: #{tpu_custom_call.1} parent=5 // pred_fallthru
        _
      %p116 = scmp.le.s32.totalorder 1, %s22
      %p117 = scmp.lt.s32.totalorder %s22, 3
      %p118 = pnand %p116, %p117
      %p119 = pneg %p118
      // Predicated region
      $region21: #{tpu_custom_call.1} parent=5 // pred_check
        _
      $region22: #{tpu_custom_call.1} parent=5 // pred_check_branch
        %121 = sbr.rel (%p118) target = $region24
      $region23: #{tpu_custom_call.1} parent=5 // pred_region
        %s122 = ssub.s32 %s22, 1
        %s123 = sand.u32 %s35, 1
        %s124 = scalar_lea.sflag [#allocation5], %s123
        %s125 = sand.u32 %s35, 1
        %s126 = smul.addr %s125, 192
        %s127 = scalar_lea.vmem [#allocation4], %s126
        // Predicated region
        $region25: #{tpu_custom_call.1} parent=23 // pred_check
          %p128 = pneg %p48
        $region26: #{tpu_custom_call.1} parent=23 // pred_check_branch
          %130 = sbr.rel (%p128) target = $region28
        $region27: #{tpu_custom_call.1} parent=23 // pred_region
          %132 = dma.done %s124, 3072
        $region28: #{tpu_custom_call.1} parent=23 // pred_fallthru
          _
        %s133 = sand.u32 %s35, 1
        %s134 = scalar_lea.sflag [#allocation5], %s133
        %s135 = sand.u32 %s35, 1
        %s136 = smul.addr %s135, 192
        %s137 = scalar_lea.vmem [#allocation4], %s136
        %p138 = pneg %p48
        %p139 = pneg %p45
        %p140 = pneg %p74
        %p141 = pneg %p71
        %s142 = sand.u32 %s61, 1
        %s143 = scalar_lea.sflag [#allocation6], %s142
        %s144 = sand.u32 %s61, 1
        %s145 = smul.addr %s144, 128
        %s146 = scalar_lea.vmem [#allocation7], %s145
        %s147 = smul.u32 8, %s27
        %s148 = smul.u32 8, %s27
        loop: start=0, step=1, limit=8
        $region29: #{tpu_custom_call.1} parent=23 // loop_pre_header
          _
        $region30: #{tpu_custom_call.1} parent=23 // loop_header
          %s150 = sphi 0, %s154
          %p151 = scmp.ge.s32.totalorder %s150, 8
        $region31: #{tpu_custom_call.1} parent=23 // loop_header_branch
          %153 = sbr.rel (%p151) target = $region35
        $region32: #{tpu_custom_call.1} parent=23 // loop_body
          %s155 = smul.u32 %s27, 8
          %s156 = sadd.s32 %s155, %s150
          %s157 = smul.u32 %s156, 2
          %s158 = sld [smem:[#allocation3 + %s157]]
          %s159 = sadd.s32 %s157, 1
          %s160 = sld [smem:[#allocation3 + %s159]]
          %s161 = smul.u32 %s150, 24
          %s162 = sadd.s32 %s160, %s161
          %s163 = scalar_lea.vmem %s127, %s162 [#allocation4]
          %v164 = vld [vmem:[%s163] sm:$0xff]
          %v165 = vld [vmem:[%s163 + $0x8] sm:$0xff]
          %p166 = scmp.eq.s32.totalorder %s158, 1
          %s167 = scalar_select %p166, 1, 0
          %v168 = vstv %s167
          %vm169 = vcmp.eq.s32.totalorder %v168, 1
          %172 = vrot.lane.b32.xlu0 %v164, 4
          %v173 = vpop.permute.xlu0 %172
          %174 = vrot.lane.b32.xlu0 %v165, 4
          %v175 = vpop.permute.xlu0 %174
          %v178 = vsel %vm169, %v164, %v173
          %v179 = vsel %vm169, %v165, %v175
          %p180 = scmp.eq.s32.totalorder %s158, 2
          %s181 = scalar_select %p180, 1, 0
          %v182 = vstv %s181
          %vm183 = vcmp.eq.s32.totalorder %v182, 1
          %186 = vrot.lane.b32.xlu0 %v178, 4
          %v187 = vpop.permute.xlu0 %186
          %188 = vrot.lane.b32.xlu0 %v179, 4
          %v189 = vpop.permute.xlu0 %188
          %v192 = vsel %vm183, %v164, %v187
          %v193 = vsel %vm183, %v165, %v189
          %p194 = scmp.eq.s32.totalorder %s158, 3
          %s195 = scalar_select %p194, 1, 0
          %v196 = vstv %s195
          %vm197 = vcmp.eq.s32.totalorder %v196, 1
          %200 = vrot.lane.b32.xlu0 %v192, 4
          %v201 = vpop.permute.xlu0 %200
          %202 = vrot.lane.b32.xlu0 %v193, 4
          %v203 = vpop.permute.xlu0 %202
          %v206 = vsel %vm197, %v164, %v201
          %v207 = vsel %vm197, %v165, %v203
          %p208 = scmp.eq.s32.totalorder %s158, 4
          %s209 = scalar_select %p208, 1, 0
          %v210 = vstv %s209
          %vm211 = vcmp.eq.s32.totalorder %v210, 1
          %214 = vrot.lane.b32.xlu0 %v206, 4
          %v215 = vpop.permute.xlu0 %214
          %216 = vrot.lane.b32.xlu0 %v207, 4
          %v217 = vpop.permute.xlu0 %216
          %v220 = vsel %vm211, %v164, %v215
          %v221 = vsel %vm211, %v165, %v217
          %p222 = scmp.eq.s32.totalorder %s158, 5
          %s223 = scalar_select %p222, 1, 0
          %v224 = vstv %s223
          %vm225 = vcmp.eq.s32.totalorder %v224, 1
          %228 = vrot.lane.b32.xlu0 %v220, 4
          %v229 = vpop.permute.xlu0 %228
          %230 = vrot.lane.b32.xlu0 %v221, 4
          %v231 = vpop.permute.xlu0 %230
          %v234 = vsel %vm225, %v164, %v229
          %v235 = vsel %vm225, %v165, %v231
          %p236 = scmp.eq.s32.totalorder %s158, 6
          %s237 = scalar_select %p236, 1, 0
          %v238 = vstv %s237
          %vm239 = vcmp.eq.s32.totalorder %v238, 1
          %242 = vrot.lane.b32.xlu0 %v234, 4
          %v243 = vpop.permute.xlu0 %242
          %244 = vrot.lane.b32.xlu0 %v235, 4
          %v245 = vpop.permute.xlu0 %244
          %v248 = vsel %vm239, %v164, %v243
          %v249 = vsel %vm239, %v165, %v245
          %p250 = scmp.eq.s32.totalorder %s158, 7
          %s251 = scalar_select %p250, 1, 0
          %v252 = vstv %s251
          %vm253 = vcmp.eq.s32.totalorder %v252, 1
          %256 = vrot.lane.b32.xlu0 %v248, 4
          %v257 = vpop.permute.xlu0 %256
          %258 = vrot.lane.b32.xlu0 %v249, 4
          %v259 = vpop.permute.xlu0 %258
          %v262 = vsel %vm253, %v164, %v257
          %v263 = vsel %vm253, %v165, %v259
          %p264 = scmp.eq.s32.totalorder %s158, 8
          %s265 = scalar_select %p264, 1, 0
          %v266 = vstv %s265
          %vm267 = vcmp.eq.s32.totalorder %v266, 1
          %270 = vrot.lane.b32.xlu0 %v262, 4
          %v271 = vpop.permute.xlu0 %270
          %272 = vrot.lane.b32.xlu0 %v263, 4
          %v273 = vpop.permute.xlu0 %272
          %v276 = vsel %vm267, %v164, %v271
          %v277 = vsel %vm267, %v165, %v273
          %280 = vrot.lane.b32.xlu0 %v276, 96
          %v281 = vpop.permute.xlu0 %280
          %282 = vrot.lane.b32.xlu0 %v277, 96
          %v283 = vpop.permute.xlu0 %282
          %s286 = smul.u32 %s150, 16
          %s287 = scalar_lea.vmem %s146, %s286 [#allocation7]
          %vm288 = vcmask 523264
          %289 = vst.msk [vmem:[%s287] sm:$0xff] %vm288, %v281
          %290 = vst.msk [vmem:[%s287 + $0x8] sm:$0xff] %vm288, %v283
        $region33: #{tpu_custom_call.1} parent=23 // loop_footer
          %s154 = sadd.s32 1, %s150
        $region34: #{tpu_custom_call.1} parent=23 // loop_footer_branch
          %149 = sbr.rel target = $region30
        $region35: #{tpu_custom_call.1} parent=23 // loop_exit
          _
        %s291 = sand.u32 %s61, 1
        %s292 = scalar_lea.sflag [#allocation6], %s291
        %s293 = sand.u32 %s61, 1
        %s294 = smul.addr %s293, 128
        %s295 = scalar_lea.vmem [#allocation7], %s294
        // Predicated region
        $region36: #{tpu_custom_call.1} parent=23 // pred_check
          %p296 = pneg %p71
        $region37: #{tpu_custom_call.1} parent=23 // pred_check_branch
          %298 = sbr.rel (%p296) target = $region39
        $region38: #{tpu_custom_call.1} parent=23 // pred_region
          %s299 = smul.u32 8, %s27
          %301 = vsyncadd %s292, 0
          %s302 = smul.addr %s299, 2
          %s303 = smul.addr %s302, 8
          %s304 = scalar_lea.hbm %s2, %s303
          %s305 = sshll.u32 %s295, 4
          %s306 = int_to_ptr.vmem [resolvable:$true] %s305
          %s307 = sshll.u32 %s304, 4
          %s308 = int_to_ptr.hbm [resolvable:$true] %s307
          %313 = dma.vmem_to_hbm [thread:$0]  %s306, 2048, %s308, %s292, 128, 128, 8
        $region39: #{tpu_custom_call.1} parent=23 // pred_fallthru
          _
      $region24: #{tpu_custom_call.1} parent=5 // pred_fallthru
        _
      %p314 = scmp.le.s32.totalorder 2, %s22
      // Predicated region
      $region40: #{tpu_custom_call.1} parent=5 // pred_check
        %p315 = pneg %p314
      $region41: #{tpu_custom_call.1} parent=5 // pred_check_branch
        %317 = sbr.rel (%p315) target = $region43
      $region42: #{tpu_custom_call.1} parent=5 // pred_region
        %s318 = ssub.s32 %s22, 2
        // Predicated region
        $region44: #{tpu_custom_call.1} parent=42 // pred_check
          %p319 = pneg %p77
        $region45: #{tpu_custom_call.1} parent=42 // pred_check_branch
          %321 = sbr.rel (%p319) target = $region47
        $region46: #{tpu_custom_call.1} parent=42 // pred_region
          %s322 = sand.u32 %s62, 1
          %s323 = scalar_lea.sflag [#allocation6], %s322
          %s324 = sand.u32 %s62, 1
          %s325 = smul.addr %s324, 128
          %s326 = scalar_lea.vmem [#allocation7], %s325
          %328 = dma.done %s323, 2048
        $region47: #{tpu_custom_call.1} parent=42 // pred_fallthru
          _
      $region43: #{tpu_custom_call.1} parent=5 // pred_fallthru
        _
    $region6: #{tpu_custom_call.1} parent=1 // loop_footer
      %s26 = sadd.s32 1, %s22
    $region7: #{tpu_custom_call.1} parent=1 // loop_footer_branch
      %21 = sbr.rel target = $region3
    $region8: #{tpu_custom_call.1} parent=1 // loop_exit
      _
    %329 = vsyncpa [#allocation5], 1
    %s330 = scalar_lea.sflag [#allocation5], 1
    %331 = vsyncpa %s330, 1
    %332 = vsyncpa [#allocation6], 1
    %s333 = scalar_lea.sflag [#allocation6], 1
    %334 = vsyncpa %s333, 1

</llo_original>
